<compile_context>
chip_gen: v5e
topology: v5e:2x2
jax: 0.10.0
libtpu: 0.0.40
codegen_flags: <defaults>
</compile_context>

<pallas_src>
from functools import partial

import jax
import jax.numpy as jnp
from jax.experimental import pallas as pl
from jax.experimental.pallas import tpu as pltpu


# ----------------------------- GELU variants -----------------------------

_SQRT_2_OVER_PI = 0.7978845608028654
_GELU_TANH_C = 0.044715


def _gelu_tanh(x):
    # torch.nn.GELU(approximate='tanh'); diverges from exact GELU at the ~1e-3 level on the
    # intermediate, which after the wd-reduction and /tau damping is <~1e-4 at the output.
    inner = _SQRT_2_OVER_PI * (x + _GELU_TANH_C * (x * x * x))
    return 0.5 * x * (1.0 + jnp.tanh(inner))


def _erf(x):
    # Abramowitz & Stegun 7.1.26 polynomial erf, max abs err ~1.5e-7 (exact divide kept for
    # fidelity; the cheap default path is the tanh-form GELU above).
    p = 0.3275911
    a1, a2, a3, a4, a5 = 0.254829592, -0.284496736, 1.421413741, -1.453152027, 1.061405429
    s = jnp.sign(x)
    ax = jnp.abs(x)
    t = 1.0 / (1.0 + p * ax)
    poly = ((((a5 * t + a4) * t + a3) * t + a2) * t + a1) * t
    return s * (1.0 - poly * jnp.exp(-ax * ax))


def _gelu_erf(x):
    # PyTorch default GELU (approximate='none'): x * 0.5 * (1 + erf(x / sqrt(2)))
    return 0.5 * x * (1.0 + _erf(x * 0.7071067811865476))


# ------------------------------- kernel ----------------------------------

def transmitter_kernel(x_ref, w1b_ref, b1b_ref, wdb_ref, gd_ref, scale_ref, out_ref,
                       *, gelu_approx, gelu_in_bf16):
    # x_ref   : (tb, K)    K = nrx*ntx*C*2, original x memory order (lane-dense, contiguous DMA)
    # w1b_ref : (K, N)     N = C*F, block-diagonal adapter-1 weight (rearrange folded in)
    # b1b_ref : (1, N)     b1 tiled C times
    # wdb_ref : (N, Fp)    (w2[0]-w2[1]) (x) I_F, zero-padded to Fp lanes
    # gd_ref  : (tb, Fp)   gumbel[...,0]-gumbel[...,1] + (b2[0]-b2[1]), lane-padded
    # scale_ref: (1,) SMEM scalar = 0.5 / tau
    # out_ref : (tb, Fp)

    # Adapter 1 + bias: one MXU matmul, batch rows as M, lane-dense K, N = C*F fills the MXU.
    h = jnp.dot(x_ref[...], w1b_ref[...], preferred_element_type=jnp.float32) + b1b_ref[...]
    if gelu_in_bf16:
        h = h.astype(jnp.bfloat16)   # v6e/v7x: packed bf16 VPU/EUP for the elementwise body
    h = _gelu_tanh(h) if gelu_approx else _gelu_erf(h)

    # Adapter 2 reduced to the class-0-minus-class-1 logit, run on the MXU: d = GELU(H) @ (wd (x) I_F).
    d = jnp.dot(h, wdb_ref[...], preferred_element_type=jnp.float32) + gd_ref[...]

    # Soft 2-class gumbel-softmax, component 0: sigmoid(d/tau) = 0.5*(1 + tanh(0.5*d/tau)).
    out_ref[...] = (0.5 + 0.5 * jnp.tanh(scale_ref[0] * d)).astype(out_ref.dtype)


# --------------------------- tiling / VMEM plan ---------------------------

def _round_up(x, m):
    return ((x + m - 1) // m) * m


def _vmem_budget_bytes():
    cap = 64 << 20                       # conservative fallback (v7x per-core physical VMEM)
    try:
        info = pltpu.get_tpu_info()
        cap = int(getattr(info, "vmem_capacity_bytes", cap))
    except Exception:
        pass
    cap = min(max(cap, 32 << 20), 128 << 20)
    return int(cap * 0.85)               # headroom for compiler-internal scratch


def _plan_batch_tile(K, N, Fp, in_bytes):
    """Largest batch tile whose per-step VMEM footprint fits the per-core budget."""
    budget = _vmem_budget_bytes()
    # Resident weight operands (conservatively counted double-buffered):
    fixed = 2 * (K * N * in_bytes) + 2 * (N * 4) + 2 * (N * Fp * 4)
    # Per-batch-row cost: x block (x2 dbl-buf), f32 H + one elementwise temporary,
    # gdiff + out blocks (x2 each).
    per_row = 2 * K * in_bytes + 2 * N * 4 + 4 * Fp * 4
    avail = budget - fixed
    tb_cap = int(avail // per_row) if avail > per_row * 8 else 8
    return max(8, tb_cap), fixed, per_row


# ------------------------------- wrapper ----------------------------------

def channel_transmitter_forward(x, w1, b1, w2, b2, gumbel, tau=5.0,
                                batch_tile=None, matmul_in_bf16=False,
                                gelu_approx=True, gelu_in_bf16=False):
    """x: (B, n_rx, n_tx, n_carrier, 2) float32 -> (B, dim_feedback) float32.

    w1: (n_rx*n_tx*2, dim_feedback)  (torch Linear weight, pre-transposed)
    b1: (dim_feedback,);  w2: (2, n_carrier);  b2: (2,)
    gumbel: (B, dim_feedback, 2) external Gumbel(0,1) noise (torch samples it internally).
    gelu_approx: tanh-form GELU (fast, default) vs exact-erf GELU (fidelity).
    gelu_in_bf16 / matmul_in_bf16: optional bf16 compute knobs for v6e/v7x (keep False on v5e).
    """
    B, n_rx, n_tx, C, cplx = x.shape
    A = n_rx * n_tx
    F = w1.shape[1]
    K = A * C * cplx              # flattened per-row input width, ORIGINAL memory order
    N = C * F                     # adapter-1 output width (lane-dense, fills the MXU)
    Fp = _round_up(F, 128)        # lane-dense output / gumbel-diff width

    in_dtype = jnp.bfloat16 if matmul_in_bf16 else jnp.float32
    in_bytes = 2 if matmul_in_bf16 else 4

    # ---- one-time weight transforms (in production: jit/cache these alongside the params) ----
    # w1_big[(a,c,j), (c',f)] = w1[a*cplx+j, f] * delta(c,c')   -> adapter-1 with the rearrange
    # 'b nrx ntx c j -> b c (nrx ntx j)' folded into the weight, so x needs no transpose at all.
    w1_v = w1.astype(jnp.float32).reshape(A, cplx, F)
    w1_big = jnp.einsum('ajf,cd->acjdf', w1_v, jnp.eye(C, dtype=jnp.float32))
    w1_big = w1_big.reshape(K, N).astype(in_dtype)
    b1_big = jnp.tile(b1.astype(jnp.float32), C).reshape(1, N)

    # wd_big[(c,f'), f] = (w2[0,c]-w2[1,c]) * delta(f',f): adapter-2's class-difference row as a matmul.
    wd = (w2[0, :] - w2[1, :]).astype(jnp.float32)
    wd_big = jnp.kron(wd.reshape(C, 1), jnp.eye(F, dtype=jnp.float32))      # (C*F, F)
    if Fp != F:
        wd_big = jnp.pad(wd_big, ((0, 0), (0, Fp - F)))
    if gelu_in_bf16:
        wd_big = wd_big.astype(jnp.bfloat16)

    # ---- activations: x in original layout (metadata reshape), gumbel diff with b2 folded in ----
    x_flat = x.reshape(B, K).astype(in_dtype)
    gd = (gumbel[..., 0] - gumbel[..., 1] + (b2[0] - b2[1])).astype(jnp.float32)   # (B, F)

    scale = (0.5 / jnp.asarray(tau, jnp.float32)).reshape(1)    # SMEM scalar: no recompile on tau change

    # ---- batch-tile planning from actual VMEM arithmetic ----
    tb_cap, fixed_bytes, per_row_bytes = _plan_batch_tile(K, N, Fp, in_bytes)
    if batch_tile is None:
        tb = min(B, tb_cap)
        if B >= 16:
            # keep >= 2 "parallel" grid steps so both v7x TensorCores get work
            tb = min(tb, -(-B // 2))
    else:
        tb = max(1, min(int(batch_tile), B))
    if tb < B:
        tb = _round_up(tb, 8)                               # tiled (tb, *) blocks need tb % 8 == 0
        tb = min(tb, max(8, (tb_cap // 8) * 8))
    num_tiles = pl.cdiv(B, tb)
    B_pad = num_tiles * tb

    if B_pad != B:
        x_flat = jnp.pad(x_flat, ((0, B_pad - B), (0, 0)))
        gd = jnp.pad(gd, ((0, B_pad - B), (0, 0)))
    if Fp != F:
        gd = jnp.pad(gd, ((0, 0), (0, Fp - F)))

    est_bytes = fixed_bytes + per_row_bytes * tb
    vmem_limit = int(min(_vmem_budget_bytes(),
                         max(32 << 20, _round_up(int(1.5 * est_bytes), 1 << 20))))

    kernel = partial(transmitter_kernel,
                     gelu_approx=bool(gelu_approx), gelu_in_bf16=bool(gelu_in_bf16))

    out = pl.pallas_call(
        kernel,
        out_shape=jax.ShapeDtypeStruct((B_pad, Fp), jnp.float32),
        grid=(num_tiles,),
        in_specs=[
            pl.BlockSpec((tb, K), lambda i: (i, 0)),             # x tile, lane-dense contiguous K
            pl.BlockSpec((K, N), lambda i: (0, 0)),              # block-diagonal adapter-1 weight
            pl.BlockSpec((1, N), lambda i: (0, 0)),              # tiled bias
            pl.BlockSpec((N, Fp), lambda i: (0, 0)),             # wd (x) I_F
            pl.BlockSpec((tb, Fp), lambda i: (i, 0)),            # gumbel diff (+ b2 diff), lane-padded
            pl.BlockSpec(memory_space=pltpu.MemorySpace.SMEM),   # 0.5 / tau scalar
        ],
        out_specs=pl.BlockSpec((tb, Fp), lambda i: (i, 0)),
        compiler_params=pltpu.CompilerParams(
            dimension_semantics=("parallel",),
            vmem_limit_bytes=vmem_limit),
    )(x_flat, w1_big, b1_big, wd_big, gd, scale)
    return out[:B, :F]


# ------------------------------ reference ---------------------------------

def reference_forward(x, w1, b1, w2, b2, gumbel, tau=5.0, approximate_gelu=False):
    """Pure-JAX mirror of the PyTorch forward (training mode, soft gumbel)."""
    B, n_rx, n_tx, C, cplx = x.shape
    xr = jnp.transpose(x, (0, 3, 1, 2, 4)).reshape(B, C, n_rx * n_tx * cplx)
    h = jax.nn.gelu(xr @ w1 + b1.reshape(1, 1, -1), approximate=approximate_gelu)   # (B, C, F)
    h = jnp.transpose(h, (0, 2, 1))                                                  # (B, F, C)
    logits = h @ w2.T + b2                                                           # (B, F, 2)
    y = jax.nn.softmax((logits + gumbel) / tau, axis=-1)
    return y[:, :, 0]


# --------------------------------- test ------------------------------------

if __name__ == "__main__":
    # Small deterministic config
    B, n_tx, n_rx, n_carrier, dim_feedback = 2, 2, 2, 16, 32
    Fin = n_tx * n_rx * 2
    tau = 5.0

    key = jax.random.PRNGKey(0)
    kx, kw1, kb1, kw2, kb2, kg = jax.random.split(key, 6)

    # input: (b, nrx, ntx, n_carrier, complex)
    x = jax.random.normal(kx, (B, n_rx, n_tx, n_carrier, 2), jnp.float32)

    # output_adapter: Linear(Fin -> dim_feedback); torch weight (F, Fin) -> pass transposed.
    bound1 = 1.0 / (Fin ** 0.5)
    w1 = jax.random.uniform(kw1, (Fin, dim_feedback), jnp.float32, -bound1, bound1)
    b1 = jax.random.uniform(kb1, (dim_feedback,), jnp.float32, -bound1, bound1)

    # output_adapter_2: Linear(n_carrier -> 2); torch weight layout (2, n_carrier).
    bound2 = 1.0 / (n_carrier ** 0.5)
    w2 = jax.random.uniform(kw2, (2, n_carrier), jnp.float32, -bound2, bound2)
    b2 = jax.random.uniform(kb2, (2,), jnp.float32, -bound2, bound2)

    # Gumbel(0,1) noise, same shape as torch's logits (B, dim_feedback, 2)
    gumbel = jax.random.gumbel(kg, (B, dim_feedback, 2), jnp.float32)

    # --- default path: tanh-form GELU (performance default) ---
    out = jax.block_until_ready(channel_transmitter_forward(x, w1, b1, w2, b2, gumbel, tau))
    assert out.shape == (B, dim_feedback)
    ref_tanh = reference_forward(x, w1, b1, w2, b2, gumbel, tau, approximate_gelu=True)
    ref_exact = reference_forward(x, w1, b1, w2, b2, gumbel, tau, approximate_gelu=False)
    assert jnp.allclose(out, ref_tanh, rtol=5e-4, atol=5e-4), (
        f"tanh-GELU path: max abs err {float(jnp.max(jnp.abs(out - ref_tanh)))}")
    assert jnp.allclose(out, ref_exact, rtol=2e-3, atol=2e-3), (
        f"vs exact-GELU module semantics: max abs err {float(jnp.max(jnp.abs(out - ref_exact)))}")

    # --- exact-erf GELU path (fidelity mode) ---
    out_e = jax.block_until_ready(
        channel_transmitter_forward(x, w1, b1, w2, b2, gumbel, tau, gelu_approx=False))
    assert jnp.allclose(out_e, ref_exact, rtol=5e-4, atol=5e-4), (
        f"erf-GELU path: max abs err {float(jnp.max(jnp.abs(out_e - ref_exact)))}")

    # --- multi-step tiled / padded path (grid > 1, tb % 8 == 0, batch + lane padding) ---
    B2 = 20
    kx2, kg2 = jax.random.split(jax.random.PRNGKey(1), 2)
    x2 = jax.random.normal(kx2, (B2, n_rx, n_tx, n_carrier, 2), jnp.float32)
    g2 = jax.random.gumbel(kg2, (B2, dim_feedback, 2), jnp.float32)
    out2 = jax.block_until_ready(
        channel_transmitter_forward(x2, w1, b1, w2, b2, g2, tau, batch_tile=8))
    ref2 = reference_forward(x2, w1, b1, w2, b2, g2, tau, approximate_gelu=True)
    assert out2.shape == (B2, dim_feedback)
    assert jnp.allclose(out2, ref2, rtol=5e-4, atol=5e-4), (
        f"tiled path: max abs err {float(jnp.max(jnp.abs(out2 - ref2)))}")

    # --- default planner path with batch splitting (>= 2 parallel grid steps, B >= 16) ---
    out3 = jax.block_until_ready(
        channel_transmitter_forward(x2, w1, b1, w2, b2, g2, tau))
    assert jnp.allclose(out3, ref2, rtol=5e-4, atol=5e-4), (
        f"planner path: max abs err {float(jnp.max(jnp.abs(out3 - ref2)))}")

    print("KERNEL_OK")
</pallas_src>

<mosaic_0001>
module attributes {stable_mosaic.version = 11 : i64} {
  func.func @transmitter_kernel(%arg0: i32, %arg1: memref<2x128xf32, #tpu.memory_space<vmem>>, %arg2: memref<128x512xf32, #tpu.memory_space<vmem>>, %arg3: memref<1x512xf32, #tpu.memory_space<vmem>>, %arg4: memref<512x128xf32, #tpu.memory_space<vmem>>, %arg5: memref<2x128xf32, #tpu.memory_space<vmem>>, %arg6: memref<1xf32, #tpu.memory_space<smem>>, %arg7: memref<2x128xf32, #tpu.memory_space<vmem>>) attributes {dimension_semantics = [#tpu.dimension_semantics<parallel>], iteration_bounds = array<i64: 1>, scalar_prefetch = 0 : i64, scratch_operands = 0 : i64, tpu.core_type = #tpu.core_type<tc>, window_params = [{transform_indices = @transform_0, window_bounds = array<i64: 2, 128>}, {pipeline_mode = #tpu.pipeline_mode<synchronous>, transform_indices = @transform_1, window_bounds = array<i64: 128, 512>}, {pipeline_mode = #tpu.pipeline_mode<synchronous>, transform_indices = @transform_2, window_bounds = array<i64: 1, 512>}, {pipeline_mode = #tpu.pipeline_mode<synchronous>, transform_indices = @transform_3, window_bounds = array<i64: 512, 128>}, {transform_indices = @transform_4, window_bounds = array<i64: 2, 128>}, {transform_indices = @transform_5, window_bounds = array<i64: 1>}, {transform_indices = @transform_6, window_bounds = array<i64: 2, 128>}]} {
    %c0 = arith.constant 0 : index
    %c0_0 = arith.constant 0 : index
    %0 = vector.load %arg1[%c0, %c0_0] : memref<2x128xf32, #tpu.memory_space<vmem>>, vector<2x128xf32>
    %c0_1 = arith.constant 0 : index
    %c0_2 = arith.constant 0 : index
    %1 = vector.load %arg2[%c0_1, %c0_2] : memref<128x512xf32, #tpu.memory_space<vmem>>, vector<128x512xf32>
    %cst = arith.constant dense<0.000000e+00> : vector<2x512xf32>
    %2 = tpu.matmul %0, %1, %cst {dimension_numbers = #tpu.dot_dimension_numbers<[1], [0], [0], [1], [0, 0, 1, 1], [], []>} : vector<2x128xf32>, vector<128x512xf32>, vector<2x512xf32> -> vector<2x512xf32>
    %c0_3 = arith.constant 0 : index
    %c0_4 = arith.constant 0 : index
    %3 = vector.load %arg3[%c0_3, %c0_4] : memref<1x512xf32, #tpu.memory_space<vmem>>, vector<1x512xf32>
    %4 = vector.broadcast %3 : vector<1x512xf32> to vector<2x512xf32>
    %5 = arith.addf %2, %4 : vector<2x512xf32>
    %6 = arith.mulf %5, %5 : vector<2x512xf32>
    %7 = arith.mulf %6, %5 : vector<2x512xf32>
    %cst_5 = arith.constant 4.471500e-02 : f32
    %8 = vector.broadcast %cst_5 : f32 to vector<2x512xf32>
    %9 = arith.mulf %8, %7 : vector<2x512xf32>
    %10 = arith.addf %5, %9 : vector<2x512xf32>
    %cst_6 = arith.constant 0.797884583 : f32
    %11 = vector.broadcast %cst_6 : f32 to vector<2x512xf32>
    %12 = arith.mulf %11, %10 : vector<2x512xf32>
    %cst_7 = arith.constant 5.000000e-01 : f32
    %13 = vector.broadcast %cst_7 : f32 to vector<2x512xf32>
    %14 = arith.mulf %13, %5 : vector<2x512xf32>
    %15 = math.tanh %12 : vector<2x512xf32>
    %cst_8 = arith.constant 1.000000e+00 : f32
    %16 = vector.broadcast %cst_8 : f32 to vector<2x512xf32>
    %17 = arith.addf %16, %15 : vector<2x512xf32>
    %18 = arith.mulf %14, %17 : vector<2x512xf32>
    %c0_9 = arith.constant 0 : index
    %c0_10 = arith.constant 0 : index
    %19 = vector.load %arg4[%c0_9, %c0_10] : memref<512x128xf32, #tpu.memory_space<vmem>>, vector<512x128xf32>
    %cst_11 = arith.constant dense<0.000000e+00> : vector<2x128xf32>
    %20 = tpu.matmul %18, %19, %cst_11 {dimension_numbers = #tpu.dot_dimension_numbers<[1], [0], [0], [1], [0, 0, 1, 1], [], []>} : vector<2x512xf32>, vector<512x128xf32>, vector<2x128xf32> -> vector<2x128xf32>
    %c0_12 = arith.constant 0 : index
    %c0_13 = arith.constant 0 : index
    %21 = vector.load %arg5[%c0_12, %c0_13] : memref<2x128xf32, #tpu.memory_space<vmem>>, vector<2x128xf32>
    %22 = arith.addf %20, %21 : vector<2x128xf32>
    %c0_14 = arith.constant 0 : index
    %23 = memref.load %arg6[%c0_14] : memref<1xf32, #tpu.memory_space<smem>>
    %24 = vector.broadcast %23 : f32 to vector<2x128xf32>
    %25 = arith.mulf %24, %22 : vector<2x128xf32>
    %26 = math.tanh %25 : vector<2x128xf32>
    %cst_15 = arith.constant 5.000000e-01 : f32
    %27 = vector.broadcast %cst_15 : f32 to vector<2x128xf32>
    %28 = arith.mulf %27, %26 : vector<2x128xf32>
    %cst_16 = arith.constant 5.000000e-01 : f32
    %29 = vector.broadcast %cst_16 : f32 to vector<2x128xf32>
    %30 = arith.addf %29, %28 : vector<2x128xf32>
    %c0_17 = arith.constant 0 : index
    %c0_18 = arith.constant 0 : index
    %31 = vector.load %arg7[%c0_17, %c0_18] : memref<2x128xf32, #tpu.memory_space<vmem>>, vector<2x128xf32>
    tpu.vector_store %arg7[%c0_17, %c0_18], %30 {strides = array<i32>} : memref<2x128xf32, #tpu.memory_space<vmem>>, vector<2x128xf32>,
    return
  }
  func.func @transform_0(%arg0: i32) -> (i32, i32) {
    %c0_i32 = arith.constant 0 : i32
    %c0_i32_0 = arith.constant 0 : i32
    return %arg0, %c0_i32 : i32, i32
  }
  func.func @transform_1(%arg0: i32) -> (i32, i32) {
    %c0_i32 = arith.constant 0 : i32
    %c0_i32_0 = arith.constant 0 : i32
    %c0_i32_1 = arith.constant 0 : i32
    return %c0_i32, %c0_i32_0 : i32, i32
  }
  func.func @transform_2(%arg0: i32) -> (i32, i32) {
    %c0_i32 = arith.constant 0 : i32
    %c0_i32_0 = arith.constant 0 : i32
    %c0_i32_1 = arith.constant 0 : i32
    return %c0_i32, %c0_i32_0 : i32, i32
  }
  func.func @transform_3(%arg0: i32) -> (i32, i32) {
    %c0_i32 = arith.constant 0 : i32
    %c0_i32_0 = arith.constant 0 : i32
    %c0_i32_1 = arith.constant 0 : i32
    return %c0_i32, %c0_i32_0 : i32, i32
  }
  func.func @transform_4(%arg0: i32) -> (i32, i32) {
    %c0_i32 = arith.constant 0 : i32
    %c0_i32_0 = arith.constant 0 : i32
    return %arg0, %c0_i32 : i32, i32
  }
  func.func @transform_5(%arg0: i32) -> i32 {
    %c0_i32 = arith.constant 0 : i32
    %c0_i32_0 = arith.constant 0 : i32
    return %c0_i32 : i32
  }
  func.func @transform_6(%arg0: i32) -> (i32, i32) {
    %c0_i32 = arith.constant 0 : i32
    %c0_i32_0 = arith.constant 0 : i32
    return %arg0, %c0_i32 : i32, i32
  }
}

</mosaic_0001>

<llo_original>
// kernel: tpu_custom_call.1
$region0: #{tpu_custom_call.1}
  #allocation0 [shape = 'u32[]', space=smem, size = 0x4, offset = 0x4, fixed_abs, tag = 'smem constant byte address 0x4 - core index']
  #allocation1 [shape = 'u32[72,128]{1,0:T(1,128)}', space=vmem, size = 0x9000, scoped, tag = 'internal scratch']
  #allocation2 [shape = 'f32[1]{0:T(128)S(6)}', space=smem, size = 0x200, scoped, tag = 'scoped memory for tpu_custom_call.1']
  %s0 = inlined_call_operand.vmem [shape: f32[2,128], index: 0, kind: input, shape index: {}]
  %s1 = inlined_call_operand.hbm [shape: f32[128,512], index: 1, kind: input, shape index: {}]
  %s2 = inlined_call_operand.hbm [shape: f32[1,512], index: 2, kind: input, shape index: {}]
  %s3 = inlined_call_operand.hbm [shape: f32[512,128], index: 3, kind: input, shape index: {}]
  %s4 = inlined_call_operand.vmem [shape: f32[2,128], index: 4, kind: input, shape index: {}]
  %s5 = inlined_call_operand.<no memory space> [shape: f32[1], index: 5, kind: input, shape index: {}]
  %s6 = inlined_call_operand.hbm [shape: f32[2,128], index: 6, kind: output, shape index: {}]
  %s7 = sld [smem:[#allocation0]]
  $region46: #{tpu_custom_call.1} parent=0
    _
  %s9 = ssub.s32 1, %s7
  %s10 = scalar_select 0, %s9, %s7
  %11 = sst [smem:[#allocation2]] %s5
  $region1: #{tpu_custom_call.1} parent=0
    #allocation3 [shape = 'u8[262144]{0}', space=vmem, size = 0x40000, scoped, tag = 'input window, operand 1, single buffered']
    #allocation4 [shape = 's32[1]{0}', space=sflag, size = 0x4, scoped, tag = 'scoped memory for tpu_custom_call.1']
    #allocation5 [shape = 's32[1]{0}', space=sflag, size = 0x4, scoped, tag = 'scoped memory for tpu_custom_call.1']
    #allocation6 [shape = 'u8[2048]{0}', space=vmem, size = 0x800, scoped, tag = 'input window, operand 2, single buffered']
    #allocation7 [shape = 's32[1]{0}', space=sflag, size = 0x4, scoped, tag = 'scoped memory for tpu_custom_call.1']
    #allocation8 [shape = 'u8[262144]{0}', space=vmem, size = 0x40000, scoped, tag = 'input window, operand 3, single buffered']
    #allocation9 [shape = 'u8[1024]{0}', space=vmem, size = 0x400, scoped, tag = 'output window, operand 0, single buffered']
    %12 = vsyncpa [#allocation4], 0
    %13 = vsyncpa [#allocation7], 0
    %14 = vsyncpa [#allocation5], 0
    // Predicated region
    $region2: #{tpu_custom_call.1} parent=1 // pred_check
      _
    $region3: #{tpu_custom_call.1} parent=1 // pred_check_branch
      %16 = sbr.rel (0) target = $region5
    $region4: #{tpu_custom_call.1} parent=1 // pred_region
      _
    $region5: #{tpu_custom_call.1} parent=1 // pred_fallthru
      _
    // Predicated region
    $region6: #{tpu_custom_call.1} parent=1 // pred_check
      _
    $region7: #{tpu_custom_call.1} parent=1 // pred_check_branch
      %18 = sbr.rel (0) target = $region9
    $region8: #{tpu_custom_call.1} parent=1 // pred_region
      %20 = vsyncadd [#allocation4], 0
      %s21 = sshll.u32 %s1, 4
      %s22 = int_to_ptr.hbm [resolvable:$true] %s21
      %s23 = sshll.u32 [#allocation3], 4
      %s24 = int_to_ptr.vmem [resolvable:$true] %s23
      %29 = dma.hbm_to_vmem [thread:$0]  %s22, 8192, %s24, [#allocation4], 512, 512, 32
    $region9: #{tpu_custom_call.1} parent=1 // pred_fallthru
      _
    // Predicated region
    $region10: #{tpu_custom_call.1} parent=1 // pred_check
      _
    $region11: #{tpu_custom_call.1} parent=1 // pred_check_branch
      %31 = sbr.rel (0) target = $region13
    $region12: #{tpu_custom_call.1} parent=1 // pred_region
      %33 = vsyncadd [#allocation7], 0
      %s35 = sshll.u32 %s2, 4
      %s36 = int_to_ptr.hbm [resolvable:$true] %s35
      %s37 = sshll.u32 [#allocation6], 4
      %s38 = int_to_ptr.vmem [resolvable:$true] %s37
      %40 = dma.hbm_to_vmem [thread:$0]  %s36, 64, %s38, [#allocation7]
    $region13: #{tpu_custom_call.1} parent=1 // pred_fallthru
      _
    // Predicated region
    $region14: #{tpu_custom_call.1} parent=1 // pred_check
      _
    $region15: #{tpu_custom_call.1} parent=1 // pred_check_branch
      %42 = sbr.rel (0) target = $region17
    $region16: #{tpu_custom_call.1} parent=1 // pred_region
      %44 = vsyncadd [#allocation7], 0
      %s45 = sshll.u32 %s3, 4
      %s46 = int_to_ptr.hbm [resolvable:$true] %s45
      %s47 = sshll.u32 [#allocation8], 4
      %s48 = int_to_ptr.vmem [resolvable:$true] %s47
      %53 = dma.hbm_to_vmem [thread:$0]  %s46, 8192, %s48, [#allocation7], 128, 128, 8
    $region17: #{tpu_custom_call.1} parent=1 // pred_fallthru
      _
    // Predicated region
    $region18: #{tpu_custom_call.1} parent=1 // pred_check
      _
    $region19: #{tpu_custom_call.1} parent=1 // pred_check_branch
      %55 = sbr.rel (0) target = $region21
    $region20: #{tpu_custom_call.1} parent=1 // pred_region
      _
    $region21: #{tpu_custom_call.1} parent=1 // pred_fallthru
      _
    // Predicated region
    $region22: #{tpu_custom_call.1} parent=1 // pred_check
      _
    $region23: #{tpu_custom_call.1} parent=1 // pred_check_branch
      %57 = sbr.rel (0) target = $region25
    $region24: #{tpu_custom_call.1} parent=1 // pred_region
      _
    $region25: #{tpu_custom_call.1} parent=1 // pred_fallthru
      _
    // Predicated region
    $region26: #{tpu_custom_call.1} parent=1 // pred_check
      _
    $region27: #{tpu_custom_call.1} parent=1 // pred_check_branch
      %59 = sbr.rel (0) target = $region29
    $region28: #{tpu_custom_call.1} parent=1 // pred_region
      %61 = dma.done [#allocation4], 8192
    $region29: #{tpu_custom_call.1} parent=1 // pred_fallthru
      _
    // Predicated region
    $region30: #{tpu_custom_call.1} parent=1 // pred_check
      _
    $region31: #{tpu_custom_call.1} parent=1 // pred_check_branch
      %63 = sbr.rel (0) target = $region33
    $region32: #{tpu_custom_call.1} parent=1 // pred_region
      %65 = dma.done [#allocation7], 64
    $region33: #{tpu_custom_call.1} parent=1 // pred_fallthru
      _
    // Predicated region
    $region34: #{tpu_custom_call.1} parent=1 // pred_check
      _
    $region35: #{tpu_custom_call.1} parent=1 // pred_check_branch
      %67 = sbr.rel (0) target = $region37
    $region36: #{tpu_custom_call.1} parent=1 // pred_region
      %69 = dma.done [#allocation7], 8192
    $region37: #{tpu_custom_call.1} parent=1 // pred_fallthru
      _
    %v70 = vld [vmem:[%s0] sm:$0x3]
    %v71 = vld [vmem:[#allocation3] sm:$0xff]
    %v72 = vld [vmem:[#allocation3 + $0x8] sm:$0xff]
    %v73 = vld [vmem:[#allocation3 + $0x10] sm:$0xff]
    %v74 = vld [vmem:[#allocation3 + $0x18] sm:$0xff]
    %v75 = vld [vmem:[#allocation3 + $0x20] sm:$0xff]
    %v76 = vld [vmem:[#allocation3 + $0x28] sm:$0xff]
    %v77 = vld [vmem:[#allocation3 + $0x30] sm:$0xff]
    %v78 = vld [vmem:[#allocation3 + $0x38] sm:$0xff]
    %v79 = vld [vmem:[#allocation3 + $0x40] sm:$0xff]
    %v80 = vld [vmem:[#allocation3 + $0x48] sm:$0xff]
    %v81 = vld [vmem:[#allocation3 + $0x50] sm:$0xff]
    %v82 = vld [vmem:[#allocation3 + $0x58] sm:$0xff]
    %v83 = vld [vmem:[#allocation3 + $0x60] sm:$0xff]
    %v84 = vld [vmem:[#allocation3 + $0x68] sm:$0xff]
    %v85 = vld [vmem:[#allocation3 + $0x70] sm:$0xff]
    %v86 = vld [vmem:[#allocation3 + $0x78] sm:$0xff]
    %v87 = vld [vmem:[#allocation3 + $0x80] sm:$0xff]
    %v88 = vld [vmem:[#allocation3 + $0x88] sm:$0xff]
    %v89 = vld [vmem:[#allocation3 + $0x90] sm:$0xff]
    %v90 = vld [vmem:[#allocation3 + $0x98] sm:$0xff]
    %v91 = vld [vmem:[#allocation3 + $0xa0] sm:$0xff]
    %v92 = vld [vmem:[#allocation3 + $0xa8] sm:$0xff]
    %v93 = vld [vmem:[#allocation3 + $0xb0] sm:$0xff]
    %v94 = vld [vmem:[#allocation3 + $0xb8] sm:$0xff]
    %v95 = vld [vmem:[#allocation3 + $0xc0] sm:$0xff]
    %v96 = vld [vmem:[#allocation3 + $0xc8] sm:$0xff]
    %v97 = vld [vmem:[#allocation3 + $0xd0] sm:$0xff]
    %v98 = vld [vmem:[#allocation3 + $0xd8] sm:$0xff]
    %v99 = vld [vmem:[#allocation3 + $0xe0] sm:$0xff]
    %v100 = vld [vmem:[#allocation3 + $0xe8] sm:$0xff]
    %v101 = vld [vmem:[#allocation3 + $0xf0] sm:$0xff]
    %v102 = vld [vmem:[#allocation3 + $0xf8] sm:$0xff]
    %v103 = vld [vmem:[#allocation3 + $0x100] sm:$0xff]
    %v104 = vld [vmem:[#allocation3 + $0x108] sm:$0xff]
    %v105 = vld [vmem:[#allocation3 + $0x110] sm:$0xff]
    %v106 = vld [vmem:[#allocation3 + $0x118] sm:$0xff]
    %v107 = vld [vmem:[#allocation3 + $0x120] sm:$0xff]
    %v108 = vld [vmem:[#allocation3 + $0x128] sm:$0xff]
    %v109 = vld [vmem:[#allocation3 + $0x130] sm:$0xff]
    %v110 = vld [vmem:[#allocation3 + $0x138] sm:$0xff]
    %v111 = vld [vmem:[#allocation3 + $0x140] sm:$0xff]
    %v112 = vld [vmem:[#allocation3 + $0x148] sm:$0xff]
    %v113 = vld [vmem:[#allocation3 + $0x150] sm:$0xff]
    %v114 = vld [vmem:[#allocation3 + $0x158] sm:$0xff]
    %v115 = vld [vmem:[#allocation3 + $0x160] sm:$0xff]
    %v116 = vld [vmem:[#allocation3 + $0x168] sm:$0xff]
    %v117 = vld [vmem:[#allocation3 + $0x170] sm:$0xff]
    %v118 = vld [vmem:[#allocation3 + $0x178] sm:$0xff]
    %v119 = vld [vmem:[#allocation3 + $0x180] sm:$0xff]
    %v120 = vld [vmem:[#allocation3 + $0x188] sm:$0xff]
    %v121 = vld [vmem:[#allocation3 + $0x190] sm:$0xff]
    %v122 = vld [vmem:[#allocation3 + $0x198] sm:$0xff]
    %v123 = vld [vmem:[#allocation3 + $0x1a0] sm:$0xff]
    %v124 = vld [vmem:[#allocation3 + $0x1a8] sm:$0xff]
    %v125 = vld [vmem:[#allocation3 + $0x1b0] sm:$0xff]
    %v126 = vld [vmem:[#allocation3 + $0x1b8] sm:$0xff]
    %v127 = vld [vmem:[#allocation3 + $0x1c0] sm:$0xff]
    %v128 = vld [vmem:[#allocation3 + $0x1c8] sm:$0xff]
    %v129 = vld [vmem:[#allocation3 + $0x1d0] sm:$0xff]
    %v130 = vld [vmem:[#allocation3 + $0x1d8] sm:$0xff]
    %v131 = vld [vmem:[#allocation3 + $0x1e0] sm:$0xff]
    %v132 = vld [vmem:[#allocation3 + $0x1e8] sm:$0xff]
    %v133 = vld [vmem:[#allocation3 + $0x1f0] sm:$0xff]
    %v134 = vld [vmem:[#allocation3 + $0x1f8] sm:$0xff]
    %v135 = vld [vmem:[#allocation6] sm:$0xf]
    %v137 = vperm.slane %v135, 0
    %v138 = vperm.slane %v135, 1
    %v139 = vperm.slane %v135, 2
    %v140 = vperm.slane %v135, 3
    %145 = vmatpush.msra.mxu0 %v131
    %146 = vmatpush.msra.mxu0 %v127
    %147 = vmatpush.msra.mxu0 %v123
    %148 = vmatpush.msra.mxu0 %v119
    %149 = vmatpush.msra.mxu0 %v115
    %150 = vmatpush.msra.mxu0 %v111
    %151 = vmatpush.msra.mxu0 %v107
    %152 = vmatpush.msra.mxu0 %v103
    %153 = vmatpush.msra.mxu0 %v99
    %154 = vmatpush.msra.mxu0 %v95
    %155 = vmatpush.msra.mxu0 %v91
    %156 = vmatpush.msra.mxu0 %v87
    %157 = vmatpush.msra.mxu0 %v83
    %158 = vmatpush.msra.mxu0 %v79
    %159 = vmatpush.msra.mxu0 %v75
    %160 = vmatpush.msra.mxu0 %v71
    %161 = vmatmul.f32.gmra.mxu0 %v70
    %v162 = vpop.f32.mrf.mxu0
    %v163 = vadd.f32 %v137, %v162
    %164 = vdwg.mxu0
    %165 = vmatpush.msra.mxu0 %v132
    %166 = vmatpush.msra.mxu0 %v128
    %167 = vmatpush.msra.mxu0 %v124
    %168 = vmatpush.msra.mxu0 %v120
    %169 = vmatpush.msra.mxu0 %v116
    %170 = vmatpush.msra.mxu0 %v112
    %171 = vmatpush.msra.mxu0 %v108
    %172 = vmatpush.msra.mxu0 %v104
    %173 = vmatpush.msra.mxu0 %v100
    %174 = vmatpush.msra.mxu0 %v96
    %175 = vmatpush.msra.mxu0 %v92
    %176 = vmatpush.msra.mxu0 %v88
    %177 = vmatpush.msra.mxu0 %v84
    %178 = vmatpush.msra.mxu0 %v80
    %179 = vmatpush.msra.mxu0 %v76
    %180 = vmatpush.msra.mxu0 %v72
    %181 = vmatmul.f32.gmra.mxu0 %v70
    %v182 = vpop.f32.mrf.mxu0
    %v183 = vadd.f32 %v138, %v182
    %184 = vdwg.mxu0
    %185 = vmatpush.msra.mxu0 %v133
    %186 = vmatpush.msra.mxu0 %v129
    %187 = vmatpush.msra.mxu0 %v125
    %188 = vmatpush.msra.mxu0 %v121
    %189 = vmatpush.msra.mxu0 %v117
    %190 = vmatpush.msra.mxu0 %v113
    %191 = vmatpush.msra.mxu0 %v109
    %192 = vmatpush.msra.mxu0 %v105
    %193 = vmatpush.msra.mxu0 %v101
    %194 = vmatpush.msra.mxu0 %v97
    %195 = vmatpush.msra.mxu0 %v93
    %196 = vmatpush.msra.mxu0 %v89
    %197 = vmatpush.msra.mxu0 %v85
    %198 = vmatpush.msra.mxu0 %v81
    %199 = vmatpush.msra.mxu0 %v77
    %200 = vmatpush.msra.mxu0 %v73
    %201 = vmatmul.f32.gmra.mxu0 %v70
    %v202 = vpop.f32.mrf.mxu0
    %v203 = vadd.f32 %v139, %v202
    %204 = vdwg.mxu0
    %205 = vmatpush.msra.mxu0 %v134
    %206 = vmatpush.msra.mxu0 %v130
    %207 = vmatpush.msra.mxu0 %v126
    %208 = vmatpush.msra.mxu0 %v122
    %209 = vmatpush.msra.mxu0 %v118
    %210 = vmatpush.msra.mxu0 %v114
    %211 = vmatpush.msra.mxu0 %v110
    %212 = vmatpush.msra.mxu0 %v106
    %213 = vmatpush.msra.mxu0 %v102
    %214 = vmatpush.msra.mxu0 %v98
    %215 = vmatpush.msra.mxu0 %v94
    %216 = vmatpush.msra.mxu0 %v90
    %217 = vmatpush.msra.mxu0 %v86
    %218 = vmatpush.msra.mxu0 %v82
    %219 = vmatpush.msra.mxu0 %v78
    %220 = vmatpush.msra.mxu0 %v74
    %221 = vmatmul.f32.gmra.mxu0 %v70
    %v222 = vpop.f32.mrf.mxu0
    %v223 = vadd.f32 %v140, %v222
    %224 = vdwg.mxu0
    %v225 = vmul.f32 %v163, %v163
    %v226 = vmul.f32 %v183, %v183
    %v227 = vmul.f32 %v203, %v203
    %v228 = vmul.f32 %v223, %v223
    %v229 = vmul.f32 %v225, %v163
    %v230 = vmul.f32 %v226, %v183
    %v231 = vmul.f32 %v227, %v203
    %v232 = vmul.f32 %v228, %v223
    %v233 = vmul.f32 %v229, 0.044715
    %v234 = vmul.f32 %v230, 0.044715
    %v235 = vmul.f32 %v231, 0.044715
    %v236 = vmul.f32 %v232, 0.044715
    %v237 = vadd.f32 %v163, %v233
    %v238 = vadd.f32 %v183, %v234
    %v239 = vadd.f32 %v203, %v235
    %v240 = vadd.f32 %v223, %v236
    %v241 = vmul.f32 %v237, 0.7978846
    %v242 = vmul.f32 %v238, 0.7978846
    %v243 = vmul.f32 %v239, 0.7978846
    %v244 = vmul.f32 %v240, 0.7978846
    %v245 = vmul.f32 %v163, 0.5
    %v246 = vmul.f32 %v183, 0.5
    %v247 = vmul.f32 %v203, 0.5
    %v248 = vmul.f32 %v223, 0.5
    %v249 = vtanh.pop %v241
    %v250 = vtanh.pop %v242
    %v251 = vtanh.pop %v243
    %v252 = vtanh.pop %v244
    %v253 = vadd.f32 %v249, 1.0
    %v254 = vadd.f32 %v250, 1.0
    %v255 = vadd.f32 %v251, 1.0
    %v256 = vadd.f32 %v252, 1.0
    %v257 = vmul.f32 %v245, %v253
    %v258 = vmul.f32 %v246, %v254
    %v259 = vmul.f32 %v247, %v255
    %v260 = vmul.f32 %v248, %v256
    %v261 = vld [vmem:[#allocation8] sm:$0xff]
    %v262 = vld [vmem:[#allocation8 + $0x8] sm:$0xff]
    %v263 = vld [vmem:[#allocation8 + $0x10] sm:$0xff]
    %v264 = vld [vmem:[#allocation8 + $0x18] sm:$0xff]
    %v265 = vld [vmem:[#allocation8 + $0x20] sm:$0xff]
    %v266 = vld [vmem:[#allocation8 + $0x28] sm:$0xff]
    %v267 = vld [vmem:[#allocation8 + $0x30] sm:$0xff]
    %v268 = vld [vmem:[#allocation8 + $0x38] sm:$0xff]
    %v269 = vld [vmem:[#allocation8 + $0x40] sm:$0xff]
    %v270 = vld [vmem:[#allocation8 + $0x48] sm:$0xff]
    %v271 = vld [vmem:[#allocation8 + $0x50] sm:$0xff]
    %v272 = vld [vmem:[#allocation8 + $0x58] sm:$0xff]
    %v273 = vld [vmem:[#allocation8 + $0x60] sm:$0xff]
    %v274 = vld [vmem:[#allocation8 + $0x68] sm:$0xff]
    %v275 = vld [vmem:[#allocation8 + $0x70] sm:$0xff]
    %v276 = vld [vmem:[#allocation8 + $0x78] sm:$0xff]
    %v277 = vld [vmem:[#allocation8 + $0x80] sm:$0xff]
    %v278 = vld [vmem:[#allocation8 + $0x88] sm:$0xff]
    %v279 = vld [vmem:[#allocation8 + $0x90] sm:$0xff]
    %v280 = vld [vmem:[#allocation8 + $0x98] sm:$0xff]
    %v281 = vld [vmem:[#allocation8 + $0xa0] sm:$0xff]
    %v282 = vld [vmem:[#allocation8 + $0xa8] sm:$0xff]
    %v283 = vld [vmem:[#allocation8 + $0xb0] sm:$0xff]
    %v284 = vld [vmem:[#allocation8 + $0xb8] sm:$0xff]
    %v285 = vld [vmem:[#allocation8 + $0xc0] sm:$0xff]
    %v286 = vld [vmem:[#allocation8 + $0xc8] sm:$0xff]
    %v287 = vld [vmem:[#allocation8 + $0xd0] sm:$0xff]
    %v288 = vld [vmem:[#allocation8 + $0xd8] sm:$0xff]
    %v289 = vld [vmem:[#allocation8 + $0xe0] sm:$0xff]
    %v290 = vld [vmem:[#allocation8 + $0xe8] sm:$0xff]
    %v291 = vld [vmem:[#allocation8 + $0xf0] sm:$0xff]
    %v292 = vld [vmem:[#allocation8 + $0xf8] sm:$0xff]
    %v293 = vld [vmem:[#allocation8 + $0x100] sm:$0xff]
    %v294 = vld [vmem:[#allocation8 + $0x108] sm:$0xff]
    %v295 = vld [vmem:[#allocation8 + $0x110] sm:$0xff]
    %v296 = vld [vmem:[#allocation8 + $0x118] sm:$0xff]
    %v297 = vld [vmem:[#allocation8 + $0x120] sm:$0xff]
    %v298 = vld [vmem:[#allocation8 + $0x128] sm:$0xff]
    %v299 = vld [vmem:[#allocation8 + $0x130] sm:$0xff]
    %v300 = vld [vmem:[#allocation8 + $0x138] sm:$0xff]
    %v301 = vld [vmem:[#allocation8 + $0x140] sm:$0xff]
    %v302 = vld [vmem:[#allocation8 + $0x148] sm:$0xff]
    %v303 = vld [vmem:[#allocation8 + $0x150] sm:$0xff]
    %v304 = vld [vmem:[#allocation8 + $0x158] sm:$0xff]
    %v305 = vld [vmem:[#allocation8 + $0x160] sm:$0xff]
    %v306 = vld [vmem:[#allocation8 + $0x168] sm:$0xff]
    %v307 = vld [vmem:[#allocation8 + $0x170] sm:$0xff]
    %v308 = vld [vmem:[#allocation8 + $0x178] sm:$0xff]
    %v309 = vld [vmem:[#allocation8 + $0x180] sm:$0xff]
    %v310 = vld [vmem:[#allocation8 + $0x188] sm:$0xff]
    %v311 = vld [vmem:[#allocation8 + $0x190] sm:$0xff]
    %v312 = vld [vmem:[#allocation8 + $0x198] sm:$0xff]
    %v313 = vld [vmem:[#allocation8 + $0x1a0] sm:$0xff]
    %v314 = vld [vmem:[#allocation8 + $0x1a8] sm:$0xff]
    %v315 = vld [vmem:[#allocation8 + $0x1b0] sm:$0xff]
    %v316 = vld [vmem:[#allocation8 + $0x1b8] sm:$0xff]
    %v317 = vld [vmem:[#allocation8 + $0x1c0] sm:$0xff]
    %v318 = vld [vmem:[#allocation8 + $0x1c8] sm:$0xff]
    %v319 = vld [vmem:[#allocation8 + $0x1d0] sm:$0xff]
    %v320 = vld [vmem:[#allocation8 + $0x1d8] sm:$0xff]
    %v321 = vld [vmem:[#allocation8 + $0x1e0] sm:$0xff]
    %v322 = vld [vmem:[#allocation8 + $0x1e8] sm:$0xff]
    %v323 = vld [vmem:[#allocation8 + $0x1f0] sm:$0xff]
    %v324 = vld [vmem:[#allocation8 + $0x1f8] sm:$0xff]
    %v325 = vld [vmem:[%s4] sm:$0x3]
    %326 = vmatpush.msra.mxu0 %v276
    %327 = vmatpush.msra.mxu0 %v275
    %328 = vmatpush.msra.mxu0 %v274
    %329 = vmatpush.msra.mxu0 %v273
    %330 = vmatpush.msra.mxu0 %v272
    %331 = vmatpush.msra.mxu0 %v271
    %332 = vmatpush.msra.mxu0 %v270
    %333 = vmatpush.msra.mxu0 %v269
    %334 = vmatpush.msra.mxu0 %v268
    %335 = vmatpush.msra.mxu0 %v267
    %336 = vmatpush.msra.mxu0 %v266
    %337 = vmatpush.msra.mxu0 %v265
    %338 = vmatpush.msra.mxu0 %v264
    %339 = vmatpush.msra.mxu0 %v263
    %340 = vmatpush.msra.mxu0 %v262
    %341 = vmatpush.msra.mxu0 %v261
    %342 = vmatmul.f32.gmra.mxu0 %v257
    %v343 = vpop.f32.mrf.mxu0
    %v344 = vadd.f32 %v325, %v343
    %345 = vdwg.mxu0
    %346 = vmatpush.msra.mxu0 %v292
    %347 = vmatpush.msra.mxu0 %v291
    %348 = vmatpush.msra.mxu0 %v290
    %349 = vmatpush.msra.mxu0 %v289
    %350 = vmatpush.msra.mxu0 %v288
    %351 = vmatpush.msra.mxu0 %v287
    %352 = vmatpush.msra.mxu0 %v286
    %353 = vmatpush.msra.mxu0 %v285
    %354 = vmatpush.msra.mxu0 %v284
    %355 = vmatpush.msra.mxu0 %v283
    %356 = vmatpush.msra.mxu0 %v282
    %357 = vmatpush.msra.mxu0 %v281
    %358 = vmatpush.msra.mxu0 %v280
    %359 = vmatpush.msra.mxu0 %v279
    %360 = vmatpush.msra.mxu0 %v278
    %361 = vmatpush.msra.mxu0 %v277
    %362 = vmatmul.f32.gmra.mxu0 %v258
    %v363 = vpop.f32.mrf.mxu0
    %v364 = vadd.f32 %v344, %v363
    %365 = vdwg.mxu0
    %366 = vmatpush.msra.mxu0 %v308
    %367 = vmatpush.msra.mxu0 %v307
    %368 = vmatpush.msra.mxu0 %v306
    %369 = vmatpush.msra.mxu0 %v305
    %370 = vmatpush.msra.mxu0 %v304
    %371 = vmatpush.msra.mxu0 %v303
    %372 = vmatpush.msra.mxu0 %v302
    %373 = vmatpush.msra.mxu0 %v301
    %374 = vmatpush.msra.mxu0 %v300
    %375 = vmatpush.msra.mxu0 %v299
    %376 = vmatpush.msra.mxu0 %v298
    %377 = vmatpush.msra.mxu0 %v297
    %378 = vmatpush.msra.mxu0 %v296
    %379 = vmatpush.msra.mxu0 %v295
    %380 = vmatpush.msra.mxu0 %v294
    %381 = vmatpush.msra.mxu0 %v293
    %382 = vmatmul.f32.gmra.mxu0 %v259
    %v383 = vpop.f32.mrf.mxu0
    %v384 = vadd.f32 %v364, %v383
    %385 = vdwg.mxu0
    %386 = vmatpush.msra.mxu0 %v324
    %387 = vmatpush.msra.mxu0 %v323
    %388 = vmatpush.msra.mxu0 %v322
    %389 = vmatpush.msra.mxu0 %v321
    %390 = vmatpush.msra.mxu0 %v320
    %391 = vmatpush.msra.mxu0 %v319
    %392 = vmatpush.msra.mxu0 %v318
    %393 = vmatpush.msra.mxu0 %v317
    %394 = vmatpush.msra.mxu0 %v316
    %395 = vmatpush.msra.mxu0 %v315
    %396 = vmatpush.msra.mxu0 %v314
    %397 = vmatpush.msra.mxu0 %v313
    %398 = vmatpush.msra.mxu0 %v312
    %399 = vmatpush.msra.mxu0 %v311
    %400 = vmatpush.msra.mxu0 %v310
    %401 = vmatpush.msra.mxu0 %v309
    %402 = vmatmul.f32.gmra.mxu0 %v260
    %v403 = vpop.f32.mrf.mxu0
    %v404 = vadd.f32 %v384, %v403
    %405 = vdwg.mxu0
    %s406 = sld [smem:[#allocation2]]
    %v407 = vstv %s406
    %v408 = vmul.f32 %v407, %v404
    %v409 = vtanh.pop %v408
    %v410 = vmul.f32 %v409, 0.5
    %v411 = vadd.f32 %v410, 0.5
    %412 = vst [vmem:[#allocation9] sm:$0x3] %v411
    // Predicated region
    $region38: #{tpu_custom_call.1} parent=1 // pred_check
      _
    $region39: #{tpu_custom_call.1} parent=1 // pred_check_branch
      %414 = sbr.rel (0) target = $region41
    $region40: #{tpu_custom_call.1} parent=1 // pred_region
      %416 = vsyncadd [#allocation5], 0
      %s418 = sshll.u32 [#allocation9], 4
      %s419 = int_to_ptr.vmem [resolvable:$true] %s418
      %s420 = sshll.u32 %s6, 4
      %s421 = int_to_ptr.hbm [resolvable:$true] %s420
      %423 = dma.vmem_to_hbm [thread:$0]  %s419, 32, %s421, [#allocation5]
    $region41: #{tpu_custom_call.1} parent=1 // pred_fallthru
      _
    // Predicated region
    $region42: #{tpu_custom_call.1} parent=1 // pred_check
      _
    $region43: #{tpu_custom_call.1} parent=1 // pred_check_branch
      %425 = sbr.rel (0) target = $region45
    $region44: #{tpu_custom_call.1} parent=1 // pred_region
      %427 = dma.done [#allocation5], 32
    $region45: #{tpu_custom_call.1} parent=1 // pred_fallthru
      _
    %428 = vsyncpa [#allocation4], 1
    %429 = vsyncpa [#allocation7], 1
    %430 = vsyncpa [#allocation5], 1

</llo_original>
